<compile_context>
chip_gen: v7x
topology: tpu7x:2x2x1
jax: 0.10.0
libtpu: 0.0.40
codegen_flags: <defaults>
</compile_context>

<pallas_src>
import functools

import jax
import jax.numpy as jnp
import numpy as np
from jax import lax
from jax.experimental import pallas as pl
from jax.experimental.pallas import tpu as pltpu

EPS = 1e-06


def _round_up(x, m):
    return ((x + m - 1) // m) * m


def _milr_kernel(row_ref, memberT_ref, out_ref, *, bag_fn):
    """One bag-tile of the MILR bag reduction (lane axis = bags).

    row_ref:     precomputed per-instance row
                   'max'              -> [N, 1] instance probabilities
                   'product'          -> [1, N] log(1 - p) = -softplus(logits)
                   'likelihood_ratio' -> [1, N] p/(1 - p)  = exp(logits), clamped finite
    memberT_ref: [N, TB] bf16 bag membership (counts, or 0/1 any-mask for 'max')
    out_ref:     [2, TB] f32, rows = [log(1 - p_bag), log(p_bag)]
    """
    memberT = memberT_ref[...].astype(jnp.float32)               # [N, TB]

    if bag_fn == "max":
        # torch: amax over the bag WITHOUT masking; padded slots reference
        # instance 0, which the wrapper already folded into the any-mask.
        probs_col = row_ref[...]                                 # [N, 1]
        masked = jnp.where(memberT > 0.0, probs_col, 0.0)        # [N, TB]
        bag_p = jnp.max(masked, axis=0, keepdims=True)           # [1, TB]
    elif bag_fn == "product":
        # prod_i (1 - p_i)^count_i == exp(sum_i count_i * log(1 - p_i))
        # -> single MXU contraction with a TB-wide output column dimension.
        log1m = row_ref[...]                                     # [1, N] (finite)
        s = lax.dot_general(log1m, memberT,
                            dimension_numbers=(((1,), (0,)), ((), ())),
                            preferred_element_type=jnp.float32)  # [1, TB]
        bag_p = jnp.clip(1.0 - jnp.exp(s), EPS, 1.0 - EPS)
    elif bag_fn == "likelihood_ratio":
        lr = row_ref[...]                                        # [1, N] (finite)
        lr_sum = lax.dot_general(lr, memberT,
                                 dimension_numbers=(((1,), (0,)), ((), ())),
                                 preferred_element_type=jnp.float32)  # [1, TB]
        bag_p = lr_sum / (1.0 + lr_sum)
    else:
        # TODO(synk): 'logsumexp' / 'generalized_mean' depend on logsumexp_safe()
        # and generalized_mean(), which are not defined in the provided source.
        raise NotImplementedError(bag_fn)

    # bag_log_probs = log([1 - p, p]) — assembled in registers, ONE lane-dense
    # [2, TB] store (no masked width-2 partial stores).
    out_ref[...] = jnp.concatenate([jnp.log(1.0 - bag_p), jnp.log(bag_p)], axis=0)


def milr_forward(X, weight, bias, bags, bags_mask, bag_fn, softmax_parameter=None):
    """Pallas MILR.forward.

    X [N, D] f32, weight [D, 1] f32, bias [1] f32,
    bags [B, L] int32 (padded slots set to 0), bags_mask [B, L] (1 = real slot)
    -> bag_log_probs [B, 2] f32.
    """
    del softmax_parameter  # only used by the unimplemented parameterized bag_fns
    N, D = X.shape
    B, L = bags.shape

    X = jnp.asarray(X, jnp.float32)
    w = jnp.asarray(weight, jnp.float32).reshape(D, 1)
    b = jnp.asarray(bias, jnp.float32).reshape(1)
    bags = jnp.asarray(bags, jnp.int32)
    mask_f = jnp.asarray(bags_mask, jnp.float32)

    # ---- per-instance row, hoisted out of the grid loop (tiny [N,D]@[D,1]) ---
    logits = (X @ w).reshape(N) + b[0]                          # [N]
    if bag_fn == "max":
        row = jax.nn.sigmoid(logits).reshape(N, 1)              # probs as a column
    elif bag_fn == "product":
        # log(1 - p) = -softplus(logits): always finite -> no 0*inf NaN leak
        # across bags through the membership contraction.
        row = (-jax.nn.softplus(logits)).reshape(1, N)
    elif bag_fn == "likelihood_ratio":
        # p/(1-p) = exp(logits); clamp so saturated instances stay finite and
        # cannot poison non-member bags (0 * inf = NaN) inside dot_general.
        row = jnp.exp(jnp.minimum(logits, 80.0)).reshape(1, N)
    else:
        raise NotImplementedError(bag_fn)

    # ---- bag membership via scatter (no [B, L, N] one-hot materialized) ------
    rows = jnp.arange(B, dtype=jnp.int32)[:, None]              # [B, 1]
    member = jnp.zeros((B, N), jnp.float32)
    if bag_fn == "max":
        # Unmasked any-membership: padded slots contribute instance 0, exactly
        # like torch's instance_probs[bags].amax(dim=1) on padded index arrays.
        member = member.at[rows, bags].set(jnp.ones_like(mask_f))
    else:
        # Masked multiplicity counts (padded slots contribute nothing).
        # NOTE: counts stay exact in bf16 up to 256 repeats of one instance/bag.
        member = member.at[rows, bags].add(mask_f)

    # ---- tile over bags on the LANE axis --------------------------------------
    TB = 512 if B >= 512 else _round_up(B, 128)
    B_pad = _round_up(B, TB)
    memberT = jnp.pad(member, ((0, B_pad - B), (0, 0))).T.astype(jnp.bfloat16)  # [N, B_pad]

    kernel = functools.partial(_milr_kernel, bag_fn=bag_fn)
    out = pl.pallas_call(
        kernel,
        out_shape=jax.ShapeDtypeStruct((2, B_pad), jnp.float32),
        grid=(B_pad // TB,),
        in_specs=[
            pl.BlockSpec(tuple(row.shape), lambda i: (0, 0)),   # instance row (resident, tiny)
            pl.BlockSpec((N, TB), lambda i: (0, i)),            # bf16 membership tile
        ],
        out_specs=pl.BlockSpec((2, TB), lambda i: (0, i)),      # lane-dense output slab
        compiler_params=pltpu.CompilerParams(
            dimension_semantics=("parallel",),
            vmem_limit_bytes=48 * 1024 * 1024,                  # conservative for v7x's 64 MiB
        ),
    )(row, memberT)
    return out[:, :B].T                                         # [B, 2]


def milr_reference(X, weight, bias, bags, mask, bag_fn):
    """Plain-JAX reference mirroring the PyTorch forward."""
    probs = jax.nn.sigmoid(X @ weight + bias)            # [N, 1]
    bagged = probs[bags][..., 0]                         # [B, L]
    if bag_fn == "max":
        p = jnp.max(bagged, axis=1, keepdims=True)
    elif bag_fn == "product":
        bm = bagged * mask
        p = jnp.clip(1.0 - jnp.prod(1.0 - bm, axis=1, keepdims=True), EPS, 1.0 - EPS)
    elif bag_fn == "likelihood_ratio":
        bm = bagged * mask
        s = jnp.sum(bm / (1.0 - bm), axis=1, keepdims=True)
        p = s / (1.0 + s)
    else:
        raise NotImplementedError(bag_fn)
    return jnp.log(jnp.concatenate([1.0 - p, p], axis=1))


if __name__ == "__main__":
    key = jax.random.PRNGKey(0)
    k1, k2 = jax.random.split(key, 2)

    N, D = 16, 32                                        # instances, features
    X = jax.random.normal(k1, (N, D), dtype=jnp.float32)

    # Deterministic "Linear(D, 1)" parameters.
    weight = (jax.random.normal(k2, (D, 1), dtype=jnp.float32) * 0.2).astype(jnp.float32)
    bias = jnp.array([0.05], dtype=jnp.float32)

    # Bags of instance indices (as in MILR._process_bags: pad with N, then
    # replace padding by 0 and keep a mask).
    bag_lists = [[0, 1, 2], [3, 4, 5, 6, 7], [8, 9], [10, 11, 12, 13, 14, 15]]
    B = len(bag_lists)
    L = max(len(b) for b in bag_lists)
    pad_value = N
    bags_np = np.full((B, L), pad_value, dtype=np.int32)
    for i, bl in enumerate(bag_lists):
        bags_np[i, : len(bl)] = np.asarray(bl, dtype=np.int32)
    mask_np = bags_np != pad_value
    bags_np[~mask_np] = 0

    bags = jnp.asarray(bags_np, dtype=jnp.int32)
    bags_mask = jnp.asarray(mask_np.astype(np.float32))

    for bag_fn in ("max", "product", "likelihood_ratio"):
        out = milr_forward(X, weight, bias, bags, bags_mask, bag_fn)
        out = jax.block_until_ready(out)
        ref = milr_reference(X, weight, bias, bags, bags_mask, bag_fn)
        np.testing.assert_allclose(np.asarray(out), np.asarray(ref), rtol=5e-5, atol=2e-5)

    print("KERNEL_OK")
</pallas_src>

<mosaic_0001>
module attributes {stable_mosaic.version = 11 : i64} {
  func.func @_milr_kernel(%arg0: i32, %arg1: memref<16x1xf32, #tpu.memory_space<vmem>>, %arg2: memref<16x128xbf16, #tpu.memory_space<vmem>>, %arg3: memref<2x128xf32, #tpu.memory_space<vmem>>) attributes {dimension_semantics = [#tpu.dimension_semantics<parallel>], iteration_bounds = array<i64: 1>, scalar_prefetch = 0 : i64, scratch_operands = 0 : i64, tpu.core_type = #tpu.core_type<tc>, window_params = [{pipeline_mode = #tpu.pipeline_mode<synchronous>, transform_indices = @transform_0, window_bounds = array<i64: 16, 1>}, {transform_indices = @transform_1, window_bounds = array<i64: 16, 128>}, {transform_indices = @transform_2, window_bounds = array<i64: 2, 128>}]} {
    %c0 = arith.constant 0 : index
    %c0_0 = arith.constant 0 : index
    %0 = vector.load %arg2[%c0, %c0_0] : memref<16x128xbf16, #tpu.memory_space<vmem>>, vector<16x128xbf16>
    %1 = arith.extf %0 : vector<16x128xbf16> to vector<16x128xf32>
    %c0_1 = arith.constant 0 : index
    %c0_2 = arith.constant 0 : index
    %2 = vector.load %arg1[%c0_1, %c0_2] : memref<16x1xf32, #tpu.memory_space<vmem>>, vector<16x1xf32>
    %cst = arith.constant 0.000000e+00 : f32
    %3 = vector.broadcast %cst : f32 to vector<16x128xf32>
    %4 = arith.cmpf ogt, %1, %3 : vector<16x128xf32>
    %cst_3 = arith.constant 0.000000e+00 : f32
    %5 = vector.shape_cast %2 : vector<16x1xf32> to vector<16x1xf32>
    %6 = vector.broadcast %5 : vector<16x1xf32> to vector<16x128xf32>
    %7 = vector.broadcast %cst_3 : f32 to vector<16x128xf32>
    %8 = arith.select %4, %6, %7 : vector<16x128xi1>, vector<16x128xf32>
    %cst_4 = arith.constant dense<0xFF800000> : vector<128xf32>
    %9 = vector.multi_reduction <maximumf>, %8, %cst_4 [0] : vector<16x128xf32> to vector<128xf32>
    %10 = vector.shape_cast %9 : vector<128xf32> to vector<1x128xf32>
    %cst_5 = arith.constant 1.000000e+00 : f32
    %11 = vector.broadcast %cst_5 : f32 to vector<1x128xf32>
    %12 = arith.subf %11, %10 : vector<1x128xf32>
    %13 = math.log %12 : vector<1x128xf32>
    %14 = math.log %10 : vector<1x128xf32>
    %15 = tpu.concatenate %13, %14 in 0 : vector<1x128xf32>, vector<1x128xf32> -> vector<2x128xf32>
    %c0_6 = arith.constant 0 : index
    %c0_7 = arith.constant 0 : index
    %16 = vector.load %arg3[%c0_6, %c0_7] : memref<2x128xf32, #tpu.memory_space<vmem>>, vector<2x128xf32>
    tpu.vector_store %arg3[%c0_6, %c0_7], %15 {strides = array<i32>} : memref<2x128xf32, #tpu.memory_space<vmem>>, vector<2x128xf32>,
    return
  }
  func.func @transform_0(%arg0: i32) -> (i32, i32) {
    %c0_i32 = arith.constant 0 : i32
    %c0_i32_0 = arith.constant 0 : i32
    %c0_i32_1 = arith.constant 0 : i32
    return %c0_i32, %c0_i32_0 : i32, i32
  }
  func.func @transform_1(%arg0: i32) -> (i32, i32) {
    %c0_i32 = arith.constant 0 : i32
    %c0_i32_0 = arith.constant 0 : i32
    return %c0_i32, %arg0 : i32, i32
  }
  func.func @transform_2(%arg0: i32) -> (i32, i32) {
    %c0_i32 = arith.constant 0 : i32
    %c0_i32_0 = arith.constant 0 : i32
    return %c0_i32, %arg0 : i32, i32
  }
}

</mosaic_0001>

<llo_original>
// kernel: tpu_custom_call.1
$region0: #{tpu_custom_call.1}
  #allocation0 [shape = 'u32[]', space=smem, size = 0x4, offset = 0x4, fixed_abs, tag = 'smem constant byte address 0x4 - core index']
  #allocation1 [shape = 'u32[144,128]{1,0:T(1,128)}', space=vmem, size = 0x12000, scoped, tag = 'internal scratch']
  %s0 = inlined_call_operand.vmem [shape: f32[16,1], index: 0, kind: input, shape index: {}]
  %s1 = inlined_call_operand.vmem [shape: bf16[16,128], index: 1, kind: input, shape index: {}]
  %s2 = inlined_call_operand.hbm [shape: f32[2,128], index: 2, kind: output, shape index: {}]
  %s3 = sld [smem:[#allocation0]]
  $region18: #{tpu_custom_call.1} parent=0
    _
  %s5 = ssub.s32 1, %s3
  %s6 = scalar_select 0, %s5, %s3
  $region1: #{tpu_custom_call.1} parent=0
    #allocation2 [shape = 'u8[1024]{0}', space=vmem, size = 0x400, scoped, tag = 'output window, operand 0, single buffered']
    #allocation3 [shape = 's32[1]{0}', space=sflag, size = 0x4, scoped, tag = 'scoped memory for tpu_custom_call.1']
    %7 = vsyncpa [#allocation3], 0
    // Predicated region
    $region2: #{tpu_custom_call.1} parent=1 // pred_check
      _
    $region3: #{tpu_custom_call.1} parent=1 // pred_check_branch
      %9 = sbr.rel (0) target = $region5
    $region4: #{tpu_custom_call.1} parent=1 // pred_region
      _
    $region5: #{tpu_custom_call.1} parent=1 // pred_fallthru
      _
    // Predicated region
    $region6: #{tpu_custom_call.1} parent=1 // pred_check
      _
    $region7: #{tpu_custom_call.1} parent=1 // pred_check_branch
      %11 = sbr.rel (0) target = $region9
    $region8: #{tpu_custom_call.1} parent=1 // pred_region
      _
    $region9: #{tpu_custom_call.1} parent=1 // pred_fallthru
      _
    %v12 = vld [vmem:[%s1] sm:$0xf]
    %v13 = vld [vmem:[%s1 + $0x4] sm:$0xf]
    %v14 = vunpack.c.l.bf16 %v12
    %v15 = vunpack.c.l.bf16 %v13
    %v16 = vld [vmem:[%s0] sm:$0xff]
    %v17 = vld [vmem:[%s0 + $0x8] sm:$0xff]
    %vm18 = vcmp.gt.f32.partialorder %v14, 0.0
    %vm19 = vcmp.gt.f32.partialorder %v15, 0.0
    %21 = vset.pattern.permute.xlu0 0
    %22 = vperm.xlu0 %21, %v16
    %v23 = vpop.permute.xlu0 %22
    %26 = vset.pattern.permute.xlu0 0
    %27 = vperm.xlu0 %26, %v17
    %v28 = vpop.permute.xlu0 %27
    %v30 = vsel %vm18, %v23, 0.0
    %v31 = vsel %vm19, %v28, 0.0
    %v32 = vmax.f32 %v30, %v31
    %v33 = vrot.slane %v32, 4
    %v34 = vmax.f32 %v32, %v33
    %v35 = vrot.slane %v34, 2
    %v36 = vmax.f32 %v34, %v35
    %v37 = vrot.slane %v36, 1
    %v38 = vmax.f32 %v36, %v37
    %v39 = vsub.f32 1.0, %v38
    %v40 = vlog2.pop %v39
    %v41 = vmul.f32 %v40, 0.6931472
    %v42 = vlog2.pop %v38
    %v43 = vmul.f32 %v42, 0.6931472
    %vm44 = vcmask 1040384
    %v45 = vsel %vm44, %v41, %v43
    %46 = vst [vmem:[#allocation2] sm:$0x3] %v45
    // Predicated region
    $region10: #{tpu_custom_call.1} parent=1 // pred_check
      _
    $region11: #{tpu_custom_call.1} parent=1 // pred_check_branch
      %48 = sbr.rel (0) target = $region13
    $region12: #{tpu_custom_call.1} parent=1 // pred_region
      %s50 = ssub.s32 32, 32
      %51 = vsyncadd [#allocation3], %s50
      %s53 = sshll.u32 [#allocation2], 4
      %s54 = int_to_ptr.vmem [resolvable:$true] %s53
      %56 = dma.vmem_to_hbm [thread:$0]  %s54, 32, %s2, [#allocation3]
    $region13: #{tpu_custom_call.1} parent=1 // pred_fallthru
      _
    // Predicated region
    $region14: #{tpu_custom_call.1} parent=1 // pred_check
      _
    $region15: #{tpu_custom_call.1} parent=1 // pred_check_branch
      %58 = sbr.rel (0) target = $region17
    $region16: #{tpu_custom_call.1} parent=1 // pred_region
      %59 = dma.done [#allocation3], 32
    $region17: #{tpu_custom_call.1} parent=1 // pred_fallthru
      _
    %60 = vsyncpa [#allocation3], 1

</llo_original>
